<compile_context>
chip_gen: v7x
topology: tpu7x:2x2x1
jax: 0.10.0
libtpu: 0.0.40
codegen_flags: <defaults>
</compile_context>

<pallas_src>
import functools

import jax
import jax.numpy as jnp
from jax import lax
from jax.experimental import pallas as pl
from jax.experimental.pallas import tpu as pltpu


# --------------------------------------------------------------------------
# Pass 1: h = inputs @ W^T   (tiled over B*N rows)
# --------------------------------------------------------------------------
def _project_kernel(x_ref, w_ref, h_ref):
    # x_ref: (TM, in_c), w_ref: (in_c, out_c), h_ref: (TM, out_c)
    h_ref[...] = jnp.dot(
        x_ref[...], w_ref[...], preferred_element_type=jnp.float32
    ).astype(h_ref.dtype)


# --------------------------------------------------------------------------
# Pass 2: flash-style attention with online softmax over key tiles
# --------------------------------------------------------------------------
def _attention_kernel(hq_ref, hk_ref, g_ref, b_ref, o_ref,
                      m_ref, l_ref, acc_ref, *, matmul_dtype):
    # hq_ref: (1, TQ, C)   query-row tile of h
    # hk_ref: (1, TK, C)   key-row tile of h
    # g_ref : (TQ, TK)     graph tile
    # b_ref : (1, C)       bias (constant block index -> stays VMEM resident)
    # o_ref : (1, TQ, C)   output tile (same block across k -> accumulator)
    # scratch: m_ref (TQ,1), l_ref (TQ,1), acc_ref (TQ,C)   all f32
    k_idx = pl.program_id(2)

    @pl.when(k_idx == 0)
    def _():
        m_ref[...] = jnp.full(m_ref.shape, -jnp.inf, m_ref.dtype)
        l_ref[...] = jnp.zeros(l_ref.shape, l_ref.dtype)
        acc_ref[...] = jnp.zeros(acc_ref.shape, acc_ref.dtype)

    hq = hq_ref[0]                                  # (TQ, C)
    hk = hk_ref[0]                                  # (TK, C)

    # scores = (hq @ hk^T) * graph — contract the shared feature dim of both
    # operands directly; f32 accumulation on the MXU.
    s = lax.dot_general(
        hq, hk,
        dimension_numbers=(((1,), (1,)), ((), ())),
        preferred_element_type=jnp.float32,
    ) * g_ref[...]                                  # (TQ, TK)

    # masked_fill(scores == 0, -1e16)  (same fragile ==0 semantics as PyTorch)
    s = jnp.where(s == 0.0, jnp.float32(-1e16), s)

    # Online softmax update (elementwise math stays f32 on VPU/EUP).
    m_prev = m_ref[...]
    m_new = jnp.maximum(m_prev, jnp.max(s, axis=-1, keepdims=True))
    alpha = jnp.exp(m_prev - m_new)                 # rescale of old stats
    p = jnp.exp(s - m_new)                          # (TQ, TK)
    l_ref[...] = alpha * l_ref[...] + jnp.sum(p, axis=-1, keepdims=True)
    acc_ref[...] = alpha * acc_ref[...] + jnp.dot(
        p.astype(matmul_dtype), hk, preferred_element_type=jnp.float32)
    m_ref[...] = m_new

    @pl.when(k_idx == pl.num_programs(2) - 1)
    def _():
        # Exact reciprocal: runs once per query tile on a (TQ, 1) vector, so
        # it is effectively free and keeps softmax rows summing to 1 exactly.
        inv_l = pl.reciprocal(l_ref[...], approx=False)
        o_ref[0] = (acc_ref[...] * inv_l + b_ref[...]).astype(o_ref.dtype)


# --------------------------------------------------------------------------
# Wrapper
# --------------------------------------------------------------------------
def _pick_tile(n, preferred, align):
    """Largest divisor of n that is a multiple of `align` and <= preferred;
    falls back to n itself (full extent, always legal for BlockSpec)."""
    best = None
    t = align
    limit = min(preferred, n)
    while t <= limit:
        if n % t == 0:
            best = t
        t += align
    return best if best is not None else n


def graph_attention_layer(inputs, graph, weight_t, bias, *,
                          matmul_dtype=None, tile_q=256, tile_k=256,
                          tile_m=512):
    """inputs: (B, N, in_c); graph: (N, N); weight_t: (in_c, out_c); bias: (out_c,).

    matmul_dtype: None keeps full-f32 matmuls (exact PyTorch semantics);
    jnp.bfloat16 feeds the MXU with bf16 operands + f32 accumulation — this is
    recommended on ALL TPU generations (v5e/v6e/v7x are bf16-native MXUs);
    softmax / masking / accumulation stay f32 either way.

    tile_q / tile_k: query / key tile sizes.  Defaults of 256 match the
    v6e/v7x 2x256^2 MXU; use 128 on v5e.  They are clamped to divisors of N.
    """
    B, N, in_c = inputs.shape
    out_c = weight_t.shape[1]
    mx_dtype = jnp.dtype(matmul_dtype) if matmul_dtype is not None \
        else jnp.dtype(jnp.float32)
    h_item = mx_dtype.itemsize

    # ---------------- pass 1: h = inputs @ W^T over all B*N rows -----------
    x_flat = inputs.reshape(B * N, in_c)
    tm = _pick_tile(B * N, tile_m, 8)
    h_flat = pl.pallas_call(
        _project_kernel,
        out_shape=jax.ShapeDtypeStruct((B * N, out_c), mx_dtype),
        grid_spec=pltpu.PrefetchScalarGridSpec(
            num_scalar_prefetch=0,
            grid=(B * N // tm,),
            in_specs=[
                pl.BlockSpec((tm, in_c), lambda i: (i, 0)),
                pl.BlockSpec((in_c, out_c), lambda i: (0, 0)),
            ],
            out_specs=pl.BlockSpec((tm, out_c), lambda i: (i, 0)),
        ),
        compiler_params=pltpu.CompilerParams(
            dimension_semantics=("parallel",)),
        cost_estimate=pl.CostEstimate(
            flops=int(2 * B * N * in_c * out_c),
            transcendentals=0,
            bytes_accessed=int(x_flat.size * 4 + weight_t.size * 4
                               + B * N * out_c * h_item)),
    )(x_flat, weight_t)
    h = h_flat.reshape(B, N, out_c)   # splits the leading dim only: no copy

    # ---------------- pass 2: flash-style attention ------------------------
    tq = _pick_tile(N, tile_q, 8)      # query tile: multiple of 8 sublanes
    tk = _pick_tile(N, tile_k, 128)    # key tile: multiple of 128 lanes
    nq, nk = N // tq, N // tk
    bias2d = bias.reshape(1, out_c)

    # Explicit scoped-VMEM limit sized from the actual tile footprint
    # (double-buffered operands + scratch + in-kernel temporaries).
    footprint = (2 * tq * out_c * h_item        # h_q (double-buffered)
                 + 2 * tk * out_c * h_item      # h_k (double-buffered)
                 + 2 * tq * tk * 4              # graph tile
                 + 2 * out_c * 4                # bias
                 + 2 * tq * out_c * 4           # output tile
                 + tq * out_c * 4 + 2 * tq * 4  # acc / m / l scratch
                 + 8 * tq * tk * 4)             # s / p temporaries
    vmem_limit = int(min(64 << 20, max(16 << 20, 2 * footprint)))

    kernel = functools.partial(_attention_kernel, matmul_dtype=mx_dtype)
    out = pl.pallas_call(
        kernel,
        out_shape=jax.ShapeDtypeStruct((B, N, out_c), inputs.dtype),
        grid_spec=pltpu.PrefetchScalarGridSpec(
            num_scalar_prefetch=0,
            grid=(B, nq, nk),                       # reduction axis last
            in_specs=[
                pl.BlockSpec((1, tq, out_c), lambda b, q, k: (b, q, 0)),  # h_q
                pl.BlockSpec((1, tk, out_c), lambda b, q, k: (b, k, 0)),  # h_k
                pl.BlockSpec((tq, tk), lambda b, q, k: (q, k)),           # graph
                pl.BlockSpec((1, out_c), lambda b, q, k: (0, 0)),         # bias
            ],
            out_specs=pl.BlockSpec((1, tq, out_c), lambda b, q, k: (b, q, 0)),
            scratch_shapes=[
                pltpu.VMEM((tq, 1), jnp.float32),       # running max m
                pltpu.VMEM((tq, 1), jnp.float32),       # running denom l
                pltpu.VMEM((tq, out_c), jnp.float32),   # f32 accumulator
            ],
        ),
        compiler_params=pltpu.CompilerParams(
            dimension_semantics=("parallel", "parallel", "arbitrary"),
            vmem_limit_bytes=vmem_limit),
        cost_estimate=pl.CostEstimate(
            flops=int(4 * B * N * N * out_c + 10 * B * N * N),
            transcendentals=int(B * N * N),
            bytes_accessed=int(B * N * out_c * h_item * (1 + nq)
                               + B * N * N * 4
                               + B * N * out_c * 4)),
    )(h, h, graph, bias2d)

    return out


# --------------------------------------------------------------------------
# Pure-JAX reference (matches the PyTorch module; optional bf16 operand casts
# mirror the kernel's bf16 path for apples-to-apples checking).
# --------------------------------------------------------------------------
def reference(inputs, graph, weight_t, bias, *, matmul_dtype=None):
    h = inputs @ weight_t                                         # (B, N, out_c)
    hm = h.astype(matmul_dtype) if matmul_dtype is not None else h
    scores = jnp.einsum("bnd,bmd->bnm", hm, hm,
                        preferred_element_type=jnp.float32) * graph[None]
    scores = jnp.where(scores == 0.0, -1e16, scores)
    att = jax.nn.softmax(scores, axis=2)
    attm = att.astype(matmul_dtype) if matmul_dtype is not None else att
    return jnp.einsum("bnm,bmd->bnd", attm, hm,
                      preferred_element_type=jnp.float32) + bias


if __name__ == "__main__":
    def _run_case(B, N, in_c, out_c, *, matmul_dtype, tile_q, tile_k,
                  atol, rtol, name):
        key = jax.random.PRNGKey(0)
        k_x, k_g, k_w, k_b = jax.random.split(key, 4)
        inputs = jax.random.normal(k_x, (B, N, in_c), dtype=jnp.float32)
        # Sparse-ish graph so the masked_fill(==0) path is exercised.
        graph = (jax.random.uniform(k_g, (N, N)) > 0.5).astype(jnp.float32)
        # nn.init.normal_ on W (out_c, in_c) and b (out_c,); W passed pre-transposed.
        weight = jax.random.normal(k_w, (out_c, in_c), dtype=jnp.float32)
        bias = jax.random.normal(k_b, (out_c,), dtype=jnp.float32)
        weight_t = weight.T                                       # (in_c, out_c)

        out = graph_attention_layer(inputs, graph, weight_t, bias,
                                    matmul_dtype=matmul_dtype,
                                    tile_q=tile_q, tile_k=tile_k)
        out = jax.block_until_ready(out)
        ref = reference(inputs, graph, weight_t, bias, matmul_dtype=matmul_dtype)
        assert out.shape == (B, N, out_c), f"{name}: bad shape {out.shape}"
        assert jnp.allclose(out, ref, atol=atol, rtol=rtol), f"{name}: mismatch"

    # 1) toy shape, exact f32 path (single q/k tile: TQ = TK = N).
    _run_case(2, 16, 8, 32, matmul_dtype=None, tile_q=256, tile_k=256,
              atol=2e-2, rtol=2e-2, name="f32 single-tile")

    # 2) larger graph with explicit smaller tiles so the online-softmax
    #    accumulation actually runs across several key tiles (grid=(2,4,2)).
    _run_case(2, 256, 8, 32, matmul_dtype=None, tile_q=64, tile_k=128,
              atol=2e-2, rtol=2e-2, name="f32 tiled")

    # 3) bf16 MXU operands with f32 accumulation (recommended on v5e/v6e/v7x).
    _run_case(2, 16, 8, 32, matmul_dtype=jnp.bfloat16, tile_q=256, tile_k=256,
              atol=1e-1, rtol=1e-1, name="bf16 path")

    print("KERNEL_OK")
</pallas_src>

<mosaic_0001>
module attributes {stable_mosaic.version = 11 : i64} {
  func.func @_project_kernel(%arg0: i32, %arg1: memref<32x8xf32, #tpu.memory_space<vmem>>, %arg2: memref<8x32xf32, #tpu.memory_space<vmem>>, %arg3: memref<32x32xf32, #tpu.memory_space<vmem>>) attributes {dimension_semantics = [#tpu.dimension_semantics<parallel>], iteration_bounds = array<i64: 1>, scalar_prefetch = 0 : i64, scratch_operands = 0 : i64, tpu.core_type = #tpu.core_type<tc>, window_params = [{transform_indices = @transform_0, window_bounds = array<i64: 32, 8>}, {pipeline_mode = #tpu.pipeline_mode<synchronous>, transform_indices = @transform_1, window_bounds = array<i64: 8, 32>}, {transform_indices = @transform_2, window_bounds = array<i64: 32, 32>}]} {
    %c0 = arith.constant 0 : index
    %c0_0 = arith.constant 0 : index
    %0 = vector.load %arg1[%c0, %c0_0] : memref<32x8xf32, #tpu.memory_space<vmem>>, vector<32x8xf32>
    %c0_1 = arith.constant 0 : index
    %c0_2 = arith.constant 0 : index
    %1 = vector.load %arg2[%c0_1, %c0_2] : memref<8x32xf32, #tpu.memory_space<vmem>>, vector<8x32xf32>
    %cst = arith.constant dense<0.000000e+00> : vector<32x32xf32>
    %2 = tpu.matmul %0, %1, %cst {dimension_numbers = #tpu.dot_dimension_numbers<[1], [0], [0], [1], [0, 0, 1, 1], [], []>} : vector<32x8xf32>, vector<8x32xf32>, vector<32x32xf32> -> vector<32x32xf32>
    %c0_3 = arith.constant 0 : index
    %c0_4 = arith.constant 0 : index
    %3 = vector.load %arg3[%c0_3, %c0_4] : memref<32x32xf32, #tpu.memory_space<vmem>>, vector<32x32xf32>
    tpu.vector_store %arg3[%c0_3, %c0_4], %2 {strides = array<i32>} : memref<32x32xf32, #tpu.memory_space<vmem>>, vector<32x32xf32>,
    return
  }
  func.func @transform_0(%arg0: i32) -> (i32, i32) {
    %c0_i32 = arith.constant 0 : i32
    %c0_i32_0 = arith.constant 0 : i32
    return %arg0, %c0_i32 : i32, i32
  }
  func.func @transform_1(%arg0: i32) -> (i32, i32) {
    %c0_i32 = arith.constant 0 : i32
    %c0_i32_0 = arith.constant 0 : i32
    %c0_i32_1 = arith.constant 0 : i32
    return %c0_i32, %c0_i32_0 : i32, i32
  }
  func.func @transform_2(%arg0: i32) -> (i32, i32) {
    %c0_i32 = arith.constant 0 : i32
    %c0_i32_0 = arith.constant 0 : i32
    return %arg0, %c0_i32 : i32, i32
  }
}

</mosaic_0001>

<llo_original>
// kernel: tpu_custom_call.1
$region0: #{tpu_custom_call.1}
  #allocation0 [shape = 'u32[]', space=smem, size = 0x4, offset = 0x4, fixed_abs, tag = 'smem constant byte address 0x4 - core index']
  #allocation1 [shape = 'u32[144,128]{1,0:T(1,128)}', space=vmem, size = 0x12000, scoped, tag = 'internal scratch']
  %s0 = inlined_call_operand.vmem [shape: f32[32,8], index: 0, kind: input, shape index: {}]
  %s1 = inlined_call_operand.vmem [shape: f32[8,32], index: 1, kind: input, shape index: {}]
  %s2 = inlined_call_operand.hbm [shape: f32[32,32], index: 2, kind: output, shape index: {}]
  %s3 = sld [smem:[#allocation0]]
  $region18: #{tpu_custom_call.1} parent=0
    _
  %s5 = ssub.s32 1, %s3
  %s6 = scalar_select 0, %s5, %s3
  $region1: #{tpu_custom_call.1} parent=0
    #allocation2 [shape = 'u8[16384]{0}', space=vmem, size = 0x4000, scoped, tag = 'output window, operand 0, single buffered']
    #allocation3 [shape = 's32[1]{0}', space=sflag, size = 0x4, scoped, tag = 'scoped memory for tpu_custom_call.1']
    %7 = vsyncpa [#allocation3], 0
    // Predicated region
    $region2: #{tpu_custom_call.1} parent=1 // pred_check
      _
    $region3: #{tpu_custom_call.1} parent=1 // pred_check_branch
      %9 = sbr.rel (0) target = $region5
    $region4: #{tpu_custom_call.1} parent=1 // pred_region
      _
    $region5: #{tpu_custom_call.1} parent=1 // pred_fallthru
      _
    // Predicated region
    $region6: #{tpu_custom_call.1} parent=1 // pred_check
      _
    $region7: #{tpu_custom_call.1} parent=1 // pred_check_branch
      %11 = sbr.rel (0) target = $region9
    $region8: #{tpu_custom_call.1} parent=1 // pred_region
      _
    $region9: #{tpu_custom_call.1} parent=1 // pred_fallthru
      _
    %v12 = vld [vmem:[%s0] sm:$0xff]
    %v13 = vld [vmem:[%s0 + $0x8] sm:$0xff]
    %v14 = vld [vmem:[%s0 + $0x10] sm:$0xff]
    %v15 = vld [vmem:[%s0 + $0x18] sm:$0xff]
    %v16 = vld [vmem:[%s1] sm:$0xff]
    %vm17 = vcmask 64512
    %v19 = vsel %vm17, %v12, 0
    %v22 = vsel %vm17, %v13, 0
    %v25 = vsel %vm17, %v14, 0
    %v28 = vsel %vm17, %v15, 0
    %30 = vmatprep.subr.mxu0 0.0
    %31 = vmatpush1.msra.mxu0 %v16
    %32 = vmatprep.subr.mxu0 0.0
    %33 = vmatpush1.msra.mxu0 0.0
    %34 = vmatprep.subr.mxu0 0.0
    %35 = vmatpush1.msra.mxu0 0.0
    %36 = vmatprep.subr.mxu0 0.0
    %37 = vmatpush1.msra.mxu0 0.0
    %38 = vmatprep.subr.mxu0 0.0
    %39 = vmatpush1.msra.mxu0 0.0
    %40 = vmatprep.subr.mxu0 0.0
    %41 = vmatpush1.msra.mxu0 0.0
    %42 = vmatprep.subr.mxu0 0.0
    %43 = vmatpush1.msra.mxu0 0.0
    %44 = vmatprep.subr.mxu0 0.0
    %45 = vmatpush1.msra.mxu0 0.0
    %46 = vmatprep.subr.mxu0 0.0
    %47 = vmatpush1.msra.mxu0 0.0
    %48 = vmatprep.subr.mxu0 0.0
    %49 = vmatpush1.msra.mxu0 0.0
    %50 = vmatprep.subr.mxu0 0.0
    %51 = vmatpush1.msra.mxu0 0.0
    %52 = vmatprep.subr.mxu0 0.0
    %53 = vmatpush1.msra.mxu0 0.0
    %54 = vmatprep.subr.mxu0 0.0
    %55 = vmatpush1.msra.mxu0 0.0
    %56 = vmatprep.subr.mxu0 0.0
    %57 = vmatpush1.msra.mxu0 0.0
    %58 = vmatprep.subr.mxu0 0.0
    %59 = vmatpush1.msra.mxu0 0.0
    %60 = vmatprep.subr.mxu0 0.0
    %61 = vmatpush1.msra.mxu0 0.0
    %62 = vmatprep.subr.mxu0 0.0
    %63 = vmatpush1.msra.mxu0 0.0
    %64 = vmatprep.subr.mxu0 0.0
    %65 = vmatpush1.msra.mxu0 0.0
    %66 = vmatprep.subr.mxu0 0.0
    %67 = vmatpush1.msra.mxu0 0.0
    %68 = vmatprep.subr.mxu0 0.0
    %69 = vmatpush1.msra.mxu0 0.0
    %70 = vmatprep.subr.mxu0 0.0
    %71 = vmatpush1.msra.mxu0 0.0
    %72 = vmatprep.subr.mxu0 0.0
    %73 = vmatpush1.msra.mxu0 0.0
    %74 = vmatprep.subr.mxu0 0.0
    %75 = vmatpush1.msra.mxu0 0.0
    %76 = vmatprep.subr.mxu0 0.0
    %77 = vmatpush1.msra.mxu0 0.0
    %78 = vmatprep.subr.mxu0 0.0
    %79 = vmatpush1.msra.mxu0 0.0
    %80 = vmatprep.subr.mxu0 0.0
    %81 = vmatpush1.msra.mxu0 0.0
    %82 = vmatprep.subr.mxu0 0.0
    %83 = vmatpush1.msra.mxu0 0.0
    %84 = vmatprep.subr.mxu0 0.0
    %85 = vmatpush1.msra.mxu0 0.0
    %86 = vmatprep.subr.mxu0 0.0
    %87 = vmatpush1.msra.mxu0 0.0
    %88 = vmatprep.subr.mxu0 0.0
    %89 = vmatpush1.msra.mxu0 0.0
    %90 = vmatprep.subr.mxu0 0.0
    %91 = vmatpush1.msra.mxu0 0.0
    %92 = vmatprep.subr.mxu0 0.0
    %93 = vmatpush1.msra.mxu0 0.0
    %94 = vmatprep.mubr.f32.mxu0 0.0
    %95 = vmatmul.mubr.f32.gmra.mrb[0].mxu0 %v19
    %v96 = vpop.f32.mrb[0].mxu0
    %v97 = vadd.f32 0.0, %v96
    %v98 = vpop.f32.mrb[0].mxu0
    %99 = vmatprep.mubr.f32.mxu0 0.0
    %100 = vmatmul.mubr.f32.gmra.mrb[0].mxu0 %v22
    %v101 = vpop.f32.mrb[0].mxu0
    %v102 = vadd.f32 0.0, %v101
    %v103 = vpop.f32.mrb[0].mxu0
    %104 = vmatprep.mubr.f32.mxu0 0.0
    %105 = vmatmul.mubr.f32.gmra.mrb[0].mxu0 %v25
    %v106 = vpop.f32.mrb[0].mxu0
    %v107 = vadd.f32 0.0, %v106
    %v108 = vpop.f32.mrb[0].mxu0
    %109 = vmatprep.mubr.f32.mxu0 0.0
    %110 = vmatmul.mubr.f32.gmra.mrb[0].mxu0 %v28
    %v111 = vpop.f32.mrb[0].mxu0
    %v112 = vadd.f32 0.0, %v111
    %v113 = vpop.f32.mrb[0].mxu0
    %114 = vdwg.mxu0
    %vm115 = vcmask 261120
    %116 = vst.msk [vmem:[#allocation2] sm:$0xff] %vm115, %v97
    %117 = vst.msk [vmem:[#allocation2 + $0x8] sm:$0xff] %vm115, %v102
    %118 = vst.msk [vmem:[#allocation2 + $0x10] sm:$0xff] %vm115, %v107
    %119 = vst.msk [vmem:[#allocation2 + $0x18] sm:$0xff] %vm115, %v112
    // Predicated region
    $region10: #{tpu_custom_call.1} parent=1 // pred_check
      _
    $region11: #{tpu_custom_call.1} parent=1 // pred_check_branch
      %121 = sbr.rel (0) target = $region13
    $region12: #{tpu_custom_call.1} parent=1 // pred_region
      %s123 = ssub.s32 512, 512
      %124 = vsyncadd [#allocation3], %s123
      %s125 = sshll.u32 [#allocation2], 4
      %s126 = int_to_ptr.vmem [resolvable:$true] %s125
      %131 = dma.vmem_to_hbm [thread:$0]  %s126, 512, %s2, [#allocation3], 128, 128, 8
    $region13: #{tpu_custom_call.1} parent=1 // pred_fallthru
      _
    // Predicated region
    $region14: #{tpu_custom_call.1} parent=1 // pred_check
      _
    $region15: #{tpu_custom_call.1} parent=1 // pred_check_branch
      %133 = sbr.rel (0) target = $region17
    $region16: #{tpu_custom_call.1} parent=1 // pred_region
      %134 = dma.done [#allocation3], 512
    $region17: #{tpu_custom_call.1} parent=1 // pred_fallthru
      _
    %135 = vsyncpa [#allocation3], 1

</llo_original>
